<compile_context>
chip_gen: v7x
topology: tpu7x:2x2x1
jax: 0.10.0
libtpu: 0.0.40
codegen_flags: <defaults>
</compile_context>

<pallas_src>
import functools

import jax
import jax.numpy as jnp
from jax.experimental import pallas as pl
from jax.experimental.pallas import tpu as pltpu

LANES = 128
_MIB = 2 ** 20


def _round_up(x, m):
    return (x + m - 1) // m * m


def conv3x3_kernel(x_ref, w_ref, o_ref):
    """One (batch, row-strip) grid step.

    x_ref: (1, Hs+2, Wq+2, Cin)  halo'd input strip (padded rows s*Hs .. s*Hs+Hs+1)
    w_ref: (3, Kp, Cop)          weight; rows within a kh group ordered (kw, ci), zero
                                 padded to Kp; lanes zero padded to Cop
    o_ref: (1, Hs*Wq, Cout)      flat output slab (no channel padding in HBM)
    """
    Hs = x_ref.shape[1] - 2
    Wq = x_ref.shape[2] - 2
    Cin = x_ref.shape[3]
    Kp = w_ref.shape[1]
    Cout = o_ref.shape[2]

    x = x_ref[0]                                              # (Hs+2, Wq+2, Cin)

    # kw-concatenated strip: 3 cheap lane concats instead of a 9x im2col patch.
    # Padding lanes are zeroed (their weight rows are zero anyway).
    parts = [x[:, 0:Wq, :], x[:, 1:Wq + 1, :], x[:, 2:Wq + 2, :]]
    if Kp > 3 * Cin:
        parts.append(jnp.zeros((Hs + 2, Wq, Kp - 3 * Cin), x.dtype))
    xk = jnp.concatenate(parts, axis=-1)                      # (Hs+2, Wq, Kp)

    # Three accumulating MXU passes.  The kh slice is a free leading-axis view and the
    # (Hs, Wq, Kp) -> (Hs*Wq, Kp) reshape is layout-free because Wq % 8 == 0.
    acc = jnp.dot(xk[0:Hs].reshape(Hs * Wq, Kp), w_ref[0],
                  preferred_element_type=jnp.float32)
    acc = acc + jnp.dot(xk[1:1 + Hs].reshape(Hs * Wq, Kp), w_ref[1],
                        preferred_element_type=jnp.float32)
    acc = acc + jnp.dot(xk[2:2 + Hs].reshape(Hs * Wq, Kp), w_ref[2],
                        preferred_element_type=jnp.float32)

    # Slice away the padded output channels before the store: HBM write = useful bytes.
    o_ref[0] = acc[:, :Cout].astype(o_ref.dtype)


def _vmem_bytes(hs, wq, cin, kp, cop, cd):
    """Rough VMEM working set for one grid step (lane/sublane padded)."""
    sub = lambda r: _round_up(r, 16)
    lane = lambda c: _round_up(c, LANES)
    in_blk = (hs + 2) * sub(wq + 2) * lane(cin) * cd
    xk = (hs + 2) * sub(wq) * lane(kp) * cd
    w_blk = 3 * sub(kp) * lane(cop) * cd
    m = _round_up(hs * wq, 16)
    acc = m * lane(cop) * 4
    out_blk = m * lane(cop) * 4
    # 2x in/out blocks (double buffering); weight is constant-indexed so it stays
    # resident (~1.5x for safety); plus in-kernel temporaries and slack of one strip.
    return int(2 * in_blk + 2 * out_blk + 1.5 * w_blk + xk + acc + in_blk)


def _vmem_budget_bytes():
    """Per-generation data budget (v7x: ~16 MiB of its 64 MiB/TC, v5e/v6e: ~32 MiB)."""
    cap = 64 * _MIB
    try:
        cap = int(getattr(pltpu.get_tpu_info(), "vmem_capacity_bytes", cap)) or cap
    except Exception:
        pass
    return max(8 * _MIB, min(cap, 128 * _MIB) // 4)


def _pick_strip_rows(h, wq, cin, kp, cop, cd, n_batch, budget, target_m=4096):
    """Largest strip row-count whose working set fits `budget` (M = Hs*Wq ~ target_m)."""
    hs = max(1, min(h, max(1, target_m // wq)))
    while hs > 1 and _vmem_bytes(hs, wq, cin, kp, cop, cd) > budget:
        hs -= 1
    # v7x has 2 TensorCores (megacore on older gens): a batch-1 call should still
    # produce >= 2 grid steps so both cores get work.
    if n_batch == 1 and hs == h and h > 1:
        hs = (h + 1) // 2
    return hs


def outconv_forward(x_nchw, weight_oihw, *, compute_dtype=jnp.bfloat16):
    """Matches nn.Conv2d(in_ch, out_ch, kernel_size=3, stride=1, padding=1, bias=False).

    x_nchw: (N, Cin, H, W); weight_oihw: (Cout, Cin, 3, 3) -> (N, Cout, H, W).
    """
    N, Cin, H, W = x_nchw.shape
    Cout = weight_oihw.shape[0]
    out_dtype = x_nchw.dtype
    cd = jnp.dtype(compute_dtype).itemsize

    Wq = _round_up(W, 8)               # sublane-friendly width; extra cols are discarded
    Kp = _round_up(3 * Cin, LANES)     # MXU contraction width per kh tap (zero rows in w)
    Cop = _round_up(Cout, LANES)       # MXU output width (sliced back to Cout in-kernel)

    budget = _vmem_budget_bytes()
    Hs = _pick_strip_rows(H, Wq, Cin, Kp, Cop, cd, N, budget)
    He = _round_up(H, Hs)
    S = He // Hs
    Hp, Wp2 = He + 2, Wq + 2

    # Wrapper glue (NCHW interface): transpose + spatial halo pad + bf16 cast.  Channels
    # are NOT padded in HBM.  A caller that already has NHWC/bf16 (or can consume NHWC)
    # can skip the transposes entirely.
    x_nhwc = jnp.transpose(x_nchw, (0, 2, 3, 1)).astype(compute_dtype)
    x_pad = jnp.pad(x_nhwc, ((0, 0), (1, 1 + He - H), (1, 1 + Wq - W), (0, 0)))

    # Weight -> (3, Kp, Cop); within each kh group rows are ordered (kw, ci), then zeros.
    w_k = jnp.transpose(weight_oihw, (2, 3, 1, 0)).reshape(3, 3 * Cin, Cout)
    w3 = jnp.pad(w_k, ((0, 0), (0, Kp - 3 * Cin), (0, Cop - Cout))).astype(compute_dtype)

    # Single overlapping (Hs+2)-row window per strip.  Element offsets only needed when
    # there is more than one strip; with one strip the block is the full extent.
    if S == 1:
        x_spec = pl.BlockSpec((1, Hp, Wp2, Cin), lambda n, s: (n, 0, 0, 0))
    else:
        x_spec = pl.BlockSpec((1, pl.Element(Hs + 2), Wp2, Cin),
                              lambda n, s: (n, s * Hs, 0, 0))

    est = _vmem_bytes(Hs, Wq, Cin, Kp, Cop, cd)
    # Stay well under v7x's 64 MiB/TC while giving the estimate ample headroom.
    vmem_limit = int(min(56 * _MIB, max(16 * _MIB, 3 * est)))

    out_flat = pl.pallas_call(
        conv3x3_kernel,
        out_shape=jax.ShapeDtypeStruct((N, He * Wq, Cout), out_dtype),
        grid_spec=pltpu.PrefetchScalarGridSpec(
            num_scalar_prefetch=0,
            grid=(N, S),
            in_specs=[
                x_spec,
                # Constant index map -> weight stays resident across the whole grid.
                pl.BlockSpec((3, Kp, Cop), lambda n, s: (0, 0, 0)),
            ],
            # Output written without channel padding: writeback = useful bytes only.
            out_specs=pl.BlockSpec((1, Hs * Wq, Cout), lambda n, s: (n, s, 0)),
        ),
        compiler_params=pltpu.CompilerParams(
            dimension_semantics=("parallel", "parallel"),
            vmem_limit_bytes=vmem_limit),
        cost_estimate=pl.CostEstimate(
            flops=2 * N * He * Wq * 9 * Cin * Cout,
            transcendentals=0,
            bytes_accessed=(x_pad.size * cd + w3.size * cd
                            + N * He * Wq * Cout * jnp.dtype(out_dtype).itemsize)),
    )(x_pad, w3)

    out = out_flat.reshape(N, He, Wq, Cout)[:, :H, :W, :]
    return jnp.transpose(out, (0, 3, 1, 2))  # back to NCHW for the PyTorch-like interface


if __name__ == "__main__":
    key = jax.random.PRNGKey(0)
    kx, kw_key, kx2 = jax.random.split(key, 3)

    # outconv(in_ch=4, out_ch=8) on a (2, 4, 16, 16) input.
    N, Cin, Cout, H, W = 2, 4, 8, 16, 16
    x = jax.random.normal(kx, (N, Cin, H, W), dtype=jnp.float32)
    fan_in = Cin * 3 * 3
    weight = jax.random.normal(kw_key, (Cout, Cin, 3, 3), dtype=jnp.float32) * (2.0 / fan_in) ** 0.5

    out = outconv_forward(x, weight)
    jax.block_until_ready(out)
    assert out.shape == (N, Cout, H, W)

    conv = functools.partial(
        jax.lax.conv_general_dilated, window_strides=(1, 1),
        padding=((1, 1), (1, 1)), dimension_numbers=("NCHW", "OIHW", "NCHW"))

    # Same bf16-operand / f32-accumulate contract as the kernel.
    ref_bf16 = conv(x.astype(jnp.bfloat16), weight.astype(jnp.bfloat16),
                    preferred_element_type=jnp.float32)
    assert jnp.allclose(out, ref_bf16, atol=5e-3, rtol=5e-3)
    # Coarse sanity check vs. full-f32 conv (only bf16 operand rounding differs).
    ref_f32 = conv(x, weight)
    assert jnp.allclose(out, ref_f32, atol=2e-1, rtol=2e-1)

    # Second case: batch 1 forces >= 2 row strips, exercising the overlapping-window
    # (multi-strip) path and the 2-core grid balancing.
    N2, H2, W2 = 1, 64, 24
    x2 = jax.random.normal(kx2, (N2, Cin, H2, W2), dtype=jnp.float32)
    out2 = outconv_forward(x2, weight)
    jax.block_until_ready(out2)
    assert out2.shape == (N2, Cout, H2, W2)
    ref2 = conv(x2.astype(jnp.bfloat16), weight.astype(jnp.bfloat16),
                preferred_element_type=jnp.float32)
    assert jnp.allclose(out2, ref2, atol=5e-3, rtol=5e-3)

    print("KERNEL_OK")
</pallas_src>

<mosaic_0001>
module attributes {stable_mosaic.version = 11 : i64} {
  func.func @conv3x3_kernel(%arg0: i32, %arg1: i32, %arg2: memref<1x18x18x4xbf16, #tpu.memory_space<vmem>>, %arg3: memref<3x128x128xbf16, #tpu.memory_space<vmem>>, %arg4: memref<1x256x8xf32, #tpu.memory_space<vmem>>) attributes {dimension_semantics = [#tpu.dimension_semantics<parallel>, #tpu.dimension_semantics<parallel>], iteration_bounds = array<i64: 2, 1>, scalar_prefetch = 0 : i64, scratch_operands = 0 : i64, tpu.core_type = #tpu.core_type<tc>, window_params = [{transform_indices = @transform_0, window_bounds = array<i64: 1, 18, 18, 4>}, {pipeline_mode = #tpu.pipeline_mode<synchronous>, transform_indices = @transform_1, window_bounds = array<i64: 3, 128, 128>}, {transform_indices = @transform_2, window_bounds = array<i64: 1, 256, 8>}]} {
    %c0 = arith.constant 0 : index
    %c0_0 = arith.constant 0 : index
    %c0_1 = arith.constant 0 : index
    %c0_2 = arith.constant 0 : index
    %0 = vector.load %arg2[%c0, %c0_0, %c0_1, %c0_2] : memref<1x18x18x4xbf16, #tpu.memory_space<vmem>>, vector<1x18x18x4xbf16>
    %1 = vector.shape_cast %0 : vector<1x18x18x4xbf16> to vector<18x18x4xbf16>
    %2 = vector.extract_strided_slice %1 {offsets = [0, 0, 0], sizes = [18, 16, 4], strides = [1, 1, 1]} : vector<18x18x4xbf16> to vector<18x16x4xbf16>
    %3 = vector.extract_strided_slice %1 {offsets = [0, 1, 0], sizes = [18, 16, 4], strides = [1, 1, 1]} : vector<18x18x4xbf16> to vector<18x16x4xbf16>
    %4 = vector.extract_strided_slice %1 {offsets = [0, 2, 0], sizes = [18, 16, 4], strides = [1, 1, 1]} : vector<18x18x4xbf16> to vector<18x16x4xbf16>
    %cst = arith.constant 0.000000e+00 : bf16
    %5 = vector.broadcast %cst : bf16 to vector<18x16x116xbf16>
    %6 = tpu.concatenate %2, %3, %4, %5 in 2 : vector<18x16x4xbf16>, vector<18x16x4xbf16>, vector<18x16x4xbf16>, vector<18x16x116xbf16> -> vector<18x16x128xbf16>
    %7 = vector.extract_strided_slice %6 {offsets = [0, 0, 0], sizes = [16, 16, 128], strides = [1, 1, 1]} : vector<18x16x128xbf16> to vector<16x16x128xbf16>
    %8 = vector.shape_cast %7 : vector<16x16x128xbf16> to vector<256x128xbf16>
    %c0_3 = arith.constant 0 : index
    %c0_4 = arith.constant 0 : index
    %c0_5 = arith.constant 0 : index
    %9 = vector.load %arg3[%c0_3, %c0_4, %c0_5] : memref<3x128x128xbf16, #tpu.memory_space<vmem>>, vector<1x128x128xbf16>
    %10 = vector.shape_cast %9 : vector<1x128x128xbf16> to vector<128x128xbf16>
    %cst_6 = arith.constant dense<0.000000e+00> : vector<256x128xf32>
    %11 = tpu.matmul %8, %10, %cst_6 {dimension_numbers = #tpu.dot_dimension_numbers<[1], [0], [0], [1], [0, 0, 1, 1], [], []>} : vector<256x128xbf16>, vector<128x128xbf16>, vector<256x128xf32> -> vector<256x128xf32>
    %12 = vector.extract_strided_slice %6 {offsets = [1, 0, 0], sizes = [16, 16, 128], strides = [1, 1, 1]} : vector<18x16x128xbf16> to vector<16x16x128xbf16>
    %13 = vector.shape_cast %12 : vector<16x16x128xbf16> to vector<256x128xbf16>
    %c1 = arith.constant 1 : index
    %c0_7 = arith.constant 0 : index
    %c0_8 = arith.constant 0 : index
    %14 = vector.load %arg3[%c1, %c0_7, %c0_8] : memref<3x128x128xbf16, #tpu.memory_space<vmem>>, vector<1x128x128xbf16>
    %15 = vector.shape_cast %14 : vector<1x128x128xbf16> to vector<128x128xbf16>
    %cst_9 = arith.constant dense<0.000000e+00> : vector<256x128xf32>
    %16 = tpu.matmul %13, %15, %cst_9 {dimension_numbers = #tpu.dot_dimension_numbers<[1], [0], [0], [1], [0, 0, 1, 1], [], []>} : vector<256x128xbf16>, vector<128x128xbf16>, vector<256x128xf32> -> vector<256x128xf32>
    %17 = arith.addf %11, %16 : vector<256x128xf32>
    %18 = vector.extract_strided_slice %6 {offsets = [2, 0, 0], sizes = [16, 16, 128], strides = [1, 1, 1]} : vector<18x16x128xbf16> to vector<16x16x128xbf16>
    %19 = vector.shape_cast %18 : vector<16x16x128xbf16> to vector<256x128xbf16>
    %c2 = arith.constant 2 : index
    %c0_10 = arith.constant 0 : index
    %c0_11 = arith.constant 0 : index
    %20 = vector.load %arg3[%c2, %c0_10, %c0_11] : memref<3x128x128xbf16, #tpu.memory_space<vmem>>, vector<1x128x128xbf16>
    %21 = vector.shape_cast %20 : vector<1x128x128xbf16> to vector<128x128xbf16>
    %cst_12 = arith.constant dense<0.000000e+00> : vector<256x128xf32>
    %22 = tpu.matmul %19, %21, %cst_12 {dimension_numbers = #tpu.dot_dimension_numbers<[1], [0], [0], [1], [0, 0, 1, 1], [], []>} : vector<256x128xbf16>, vector<128x128xbf16>, vector<256x128xf32> -> vector<256x128xf32>
    %23 = arith.addf %17, %22 : vector<256x128xf32>
    %24 = vector.extract_strided_slice %23 {offsets = [0, 0], sizes = [256, 8], strides = [1, 1]} : vector<256x128xf32> to vector<256x8xf32>
    %c0_13 = arith.constant 0 : index
    %c0_14 = arith.constant 0 : index
    %c0_15 = arith.constant 0 : index
    %25 = vector.load %arg4[%c0_13, %c0_14, %c0_15] : memref<1x256x8xf32, #tpu.memory_space<vmem>>, vector<1x256x8xf32>
    %26 = vector.shape_cast %25 : vector<1x256x8xf32> to vector<256x8xf32>
    %27 = vector.shape_cast %24 : vector<256x8xf32> to vector<1x256x8xf32>
    tpu.vector_store %arg4[%c0_13, %c0_14, %c0_15], %27 {strides = array<i32>} : memref<1x256x8xf32, #tpu.memory_space<vmem>>, vector<1x256x8xf32>,
    return
  }
  func.func @transform_0(%arg0: i32, %arg1: i32) -> (i32, i32, i32, i32) {
    %c0_i32 = arith.constant 0 : i32
    %c0_i32_0 = arith.constant 0 : i32
    %c0_i32_1 = arith.constant 0 : i32
    %c0_i32_2 = arith.constant 0 : i32
    return %arg0, %c0_i32, %c0_i32_0, %c0_i32_1 : i32, i32, i32, i32
  }
  func.func @transform_1(%arg0: i32, %arg1: i32) -> (i32, i32, i32) {
    %c0_i32 = arith.constant 0 : i32
    %c0_i32_0 = arith.constant 0 : i32
    %c0_i32_1 = arith.constant 0 : i32
    %c0_i32_2 = arith.constant 0 : i32
    return %c0_i32, %c0_i32_0, %c0_i32_1 : i32, i32, i32
  }
  func.func @transform_2(%arg0: i32, %arg1: i32) -> (i32, i32, i32) {
    %c0_i32 = arith.constant 0 : i32
    %c0_i32_0 = arith.constant 0 : i32
    return %arg0, %arg1, %c0_i32 : i32, i32, i32
  }
}

</mosaic_0001>

<llo_original>
// kernel: tpu_custom_call.1
$region0: #{tpu_custom_call.1}
  #allocation0 [shape = 'u32[]', space=smem, size = 0x4, offset = 0x4, fixed_abs, tag = 'smem constant byte address 0x4 - core index']
  #allocation1 [shape = 'u32[144,128]{1,0:T(1,128)}', space=vmem, size = 0x12000, scoped, tag = 'internal scratch']
  %s0 = inlined_call_operand.vmem [shape: bf16[2,18,18,4], index: 0, kind: input, shape index: {}]
  %s1 = inlined_call_operand.vmem [shape: bf16[3,128,128], index: 1, kind: input, shape index: {}]
  %s2 = inlined_call_operand.vmem [shape: f32[2,256,8], index: 2, kind: output, shape index: {}]
  %s3 = sld [smem:[#allocation0]]
  $region41: #{tpu_custom_call.1} parent=0
    _
  %s5 = ssub.s32 1, %s3
  %s6 = scalar_select 0, %s5, %s3
  loop: start=0, step=1, limit=4
  $region2: #{tpu_custom_call.1} parent=0 // loop_pre_header
    _
  $region3: #{tpu_custom_call.1} parent=0 // loop_header
    %s8 = sphi 0, %s12
    %p9 = scmp.ge.s32.totalorder %s8, 4
    %s15 = sphi 0, %s27
    %s16 = sphi 0, %s23
    %s17 = sphi 0, %s15
    %s18 = sphi 0, %s16
    %s19 = sphi 0, %s17
    %s20 = sphi 0, %s18
    %s30 = sphi 0, %s32
    %s33 = sphi 0, %s30
    %s34 = sphi 0, %s33
    %s50 = sphi 0, %s34
    %s54 = sphi 0, %s54
    %s56 = sphi 0, %s54
    %s57 = sphi 0, %s56
    %s71 = sphi 0, %s57
    %s79 = sphi 0, %s81
    %s82 = sphi 0, %s79
    %s83 = sphi 0, %s82
    %s99 = sphi 0, %s83
  $region4: #{tpu_custom_call.1} parent=0 // loop_header_branch
    %11 = sbr.rel (%p9) target = $region8
  $region5: #{tpu_custom_call.1} parent=0 // loop_body
    %s13 = ssub.s32 %s8, 1
    %s14 = ssub.s32 %s8, 2
    %s21 = sadd.s32 1, %s16
    %p22 = scmp.ge.s32.totalorder %s21, 1
    %s23 = scalar_select %p22, 0, %s21
    %s24 = sadd.s32 1, %s15
    %s25 = scalar_select %p22, %s24, %s15
    %p26 = scmp.ge.s32.totalorder %s25, 2
    %s27 = scalar_select %p26, 0, %s25
    %s28 = ssub.s32 %s15, %s27
    %p29 = scmp.eq.s32.totalorder %s28, 0
    %s31 = sadd.s32 %s30, 1
    %s32 = scalar_select %p29, %s30, %s31
    %p35 = pneg %p29
    %p36 = scmp.eq.s32.totalorder %s8, 1
    %p37 = por %p35, %p36
    %p38 = scmp.ne.s32.totalorder %s30, %s33
    %p39 = scmp.eq.s32.totalorder %s8, 0
    %p40 = por %p38, %p39
    %p41 = scmp.ne.s32.totalorder %s30, %s33
    %p42 = scmp.eq.s32.totalorder %s13, 1
    %p43 = por %p41, %p42
    %p44 = scmp.ne.s32.totalorder %s33, %s34
    %p45 = scmp.eq.s32.totalorder %s13, 0
    %p46 = por %p44, %p45
    %p47 = scmp.ne.s32.totalorder %s33, %s34
    %p48 = scmp.eq.s32.totalorder %s14, 1
    %p49 = por %p47, %p48
    %p51 = scmp.ne.s32.totalorder %s34, %s50
    %p52 = scmp.eq.s32.totalorder %s14, 0
    %p53 = por %p51, %p52
    %s55 = sadd.s32 %s54, 1
    %p58 = scmp.eq.s32.totalorder %s8, 1
    %p59 = scmp.ne.s32.totalorder %s54, %s56
    %p60 = scmp.eq.s32.totalorder %s8, 0
    %p61 = por %p59, %p60
    %p62 = scmp.ne.s32.totalorder %s54, %s56
    %p63 = scmp.eq.s32.totalorder %s13, 1
    %p64 = por %p62, %p63
    %p65 = scmp.ne.s32.totalorder %s56, %s57
    %p66 = scmp.eq.s32.totalorder %s13, 0
    %p67 = por %p65, %p66
    %p68 = scmp.ne.s32.totalorder %s56, %s57
    %p69 = scmp.eq.s32.totalorder %s14, 1
    %p70 = por %p68, %p69
    %p72 = scmp.ne.s32.totalorder %s57, %s71
    %p73 = scmp.eq.s32.totalorder %s14, 0
    %p74 = por %p72, %p73
    %s75 = ssub.s32 %s15, %s27
    %s76 = ssub.s32 %s16, %s23
    %s77 = sor.u32 %s75, %s76
    %p78 = scmp.eq.s32.totalorder %s77, 0
    %s80 = sadd.s32 %s79, 1
    %s81 = scalar_select %p78, %s79, %s80
    %p84 = pneg %p78
    %p85 = scmp.eq.s32.totalorder %s8, 1
    %p86 = por %p84, %p85
    %p87 = scmp.ne.s32.totalorder %s79, %s82
    %p88 = scmp.eq.s32.totalorder %s8, 0
    %p89 = por %p87, %p88
    %p90 = scmp.ne.s32.totalorder %s79, %s82
    %p91 = scmp.eq.s32.totalorder %s13, 1
    %p92 = por %p90, %p91
    %p93 = scmp.ne.s32.totalorder %s82, %s83
    %p94 = scmp.eq.s32.totalorder %s13, 0
    %p95 = por %p93, %p94
    %p96 = scmp.ne.s32.totalorder %s82, %s83
    %p97 = scmp.eq.s32.totalorder %s14, 1
    %p98 = por %p96, %p97
    %p100 = scmp.ne.s32.totalorder %s83, %s99
    %p101 = scmp.eq.s32.totalorder %s14, 0
    %p102 = por %p100, %p101
    %p103 = scmp.le.s32.totalorder 1, %s8
    %p104 = scmp.lt.s32.totalorder %s8, 3
    %p105 = pnand %p103, %p104
    %p106 = pneg %p105
    // Predicated region
    $region9: #{tpu_custom_call.1} parent=5 // pred_check
      _
    $region10: #{tpu_custom_call.1} parent=5 // pred_check_branch
      %108 = sbr.rel (%p105) target = $region12
    $region11: #{tpu_custom_call.1} parent=5 // pred_region
      %s109 = ssub.s32 %s8, 1
      // Predicated region
      $region13: #{tpu_custom_call.1} parent=11 // pred_check
        %p110 = pneg %p67
      $region14: #{tpu_custom_call.1} parent=11 // pred_check_branch
        %112 = sbr.rel (%p110) target = $region16
      $region15: #{tpu_custom_call.1} parent=11 // pred_region
        _
      $region16: #{tpu_custom_call.1} parent=11 // pred_fallthru
        _
    $region12: #{tpu_custom_call.1} parent=5 // pred_fallthru
      _
    %p113 = scmp.lt.s32.totalorder %s8, 2
    // Predicated region
    $region17: #{tpu_custom_call.1} parent=5 // pred_check
      %p114 = pneg %p113
    $region18: #{tpu_custom_call.1} parent=5 // pred_check_branch
      %116 = sbr.rel (%p114) target = $region20
    $region19: #{tpu_custom_call.1} parent=5 // pred_region
      // Predicated region
      $region21: #{tpu_custom_call.1} parent=19 // pred_check
        %p117 = pneg %p40
      $region22: #{tpu_custom_call.1} parent=19 // pred_check_branch
        %119 = sbr.rel (%p117) target = $region24
      $region23: #{tpu_custom_call.1} parent=19 // pred_region
        %p120 = scmp.lt.s32.totalorder %s15, 1
        %s121 = scalar_select %p120, %s15, 1
        %s122 = smul.addr %s121, 54
        %s123 = smul.addr %s122, 4
        %s124 = scalar_lea.vmem %s0, %s123
      $region24: #{tpu_custom_call.1} parent=19 // pred_fallthru
        _
    $region20: #{tpu_custom_call.1} parent=5 // pred_fallthru
      _
    %p125 = scmp.le.s32.totalorder 1, %s8
    %p126 = scmp.lt.s32.totalorder %s8, 3
    %p127 = pnand %p125, %p126
    %p128 = pneg %p127
    // Predicated region
    $region25: #{tpu_custom_call.1} parent=5 // pred_check
      _
    $region26: #{tpu_custom_call.1} parent=5 // pred_check_branch
      %130 = sbr.rel (%p127) target = $region28
    $region27: #{tpu_custom_call.1} parent=5 // pred_region
      %s131 = ssub.s32 %s8, 1
      %p132 = scmp.lt.s32.totalorder %s17, 1
      %s133 = scalar_select %p132, %s17, 1
      %s134 = smul.addr %s133, 54
      %s135 = smul.addr %s134, 4
      %s136 = scalar_lea.vmem %s0, %s135
      %p137 = pneg %p46
      %p138 = pneg %p43
      %p139 = pneg %p67
      %p140 = pneg %p64
      %p141 = pneg %p95
      %p142 = pneg %p92
      %s143 = smul.u32 32, %s18
      %p144 = scmp.lt.s32.totalorder %s17, 1
      %s145 = scalar_select %p144, %s17, 1
      %p146 = scmp.lt.s32.totalorder %s143, 31
      %s147 = scalar_select %p146, %s143, 31
      %s148 = smul.addr %s145, 32
      %s149 = sadd.s32 %s147, %s148
      %s150 = smul.addr %s149, 8
      %s151 = scalar_lea.vmem %s2, %s150
      %p152 = scmp.lt.s32.totalorder %s17, 1
      %s153 = scalar_select %p152, %s17, 1
      %s154 = smul.addr %s153, 54
      %s155 = smul.addr %s154, 4
      %s156 = scalar_lea.vmem %s0, %s155
      %s157 = smul.u32 32, %s18
      %p158 = scmp.lt.s32.totalorder %s17, 1
      %s159 = scalar_select %p158, %s17, 1
      %p160 = scmp.lt.s32.totalorder %s157, 31
      %s161 = scalar_select %p160, %s157, 31
      %s162 = smul.addr %s159, 32
      %s163 = sadd.s32 %s161, %s162
      %s164 = smul.addr %s163, 8
      %s165 = scalar_lea.vmem %s2, %s164
      %s166 = smul.u32 32, %s18
      %v168 = vld [vmem:[%s156] sm:$0xf]
      %v169 = vld [vmem:[%s156 + $0x4] sm:$0xf]
      %v170 = vld [vmem:[%s156 + $0x8] sm:$0x1]
      %v171 = vld [vmem:[%s156 + $0xc] sm:$0xf]
      %v172 = vld [vmem:[%s156 + $0x10] sm:$0xf]
      %v173 = vld [vmem:[%s156 + $0x14] sm:$0x1]
      %v174 = vld [vmem:[%s156 + $0x18] sm:$0xf]
      %v175 = vld [vmem:[%s156 + $0x1c] sm:$0xf]
      %v176 = vld [vmem:[%s156 + $0x20] sm:$0x1]
      %v177 = vld [vmem:[%s156 + $0x24] sm:$0xf]
      %v178 = vld [vmem:[%s156 + $0x28] sm:$0xf]
      %v179 = vld [vmem:[%s156 + $0x2c] sm:$0x1]
      %v180 = vld [vmem:[%s156 + $0x30] sm:$0xf]
      %v181 = vld [vmem:[%s156 + $0x34] sm:$0xf]
      %v182 = vld [vmem:[%s156 + $0x38] sm:$0x1]
      %v183 = vld [vmem:[%s156 + $0x3c] sm:$0xf]
      %v184 = vld [vmem:[%s156 + $0x40] sm:$0xf]
      %v185 = vld [vmem:[%s156 + $0x44] sm:$0x1]
      %v186 = vld [vmem:[%s156 + $0x48] sm:$0xf]
      %v187 = vld [vmem:[%s156 + $0x4c] sm:$0xf]
      %v188 = vld [vmem:[%s156 + $0x50] sm:$0x1]
      %v189 = vld [vmem:[%s156 + $0x54] sm:$0xf]
      %v190 = vld [vmem:[%s156 + $0x58] sm:$0xf]
      %v191 = vld [vmem:[%s156 + $0x5c] sm:$0x1]
      %v192 = vld [vmem:[%s156 + $0x60] sm:$0xf]
      %v193 = vld [vmem:[%s156 + $0x64] sm:$0xf]
      %v194 = vld [vmem:[%s156 + $0x68] sm:$0x1]
      %v195 = vld [vmem:[%s156 + $0x6c] sm:$0xf]
      %v196 = vld [vmem:[%s156 + $0x70] sm:$0xf]
      %v197 = vld [vmem:[%s156 + $0x74] sm:$0x1]
      %v198 = vld [vmem:[%s156 + $0x78] sm:$0xf]
      %v199 = vld [vmem:[%s156 + $0x7c] sm:$0xf]
      %v200 = vld [vmem:[%s156 + $0x80] sm:$0x1]
      %v201 = vld [vmem:[%s156 + $0x84] sm:$0xf]
      %v202 = vld [vmem:[%s156 + $0x88] sm:$0xf]
      %v203 = vld [vmem:[%s156 + $0x8c] sm:$0x1]
      %v204 = vld [vmem:[%s156 + $0x90] sm:$0xf]
      %v205 = vld [vmem:[%s156 + $0x94] sm:$0xf]
      %v206 = vld [vmem:[%s156 + $0x98] sm:$0x1]
      %v207 = vld [vmem:[%s156 + $0x9c] sm:$0xf]
      %v208 = vld [vmem:[%s156 + $0xa0] sm:$0xf]
      %v209 = vld [vmem:[%s156 + $0xa4] sm:$0x1]
      %v210 = vld [vmem:[%s156 + $0xa8] sm:$0xf]
      %v211 = vld [vmem:[%s156 + $0xac] sm:$0xf]
      %v212 = vld [vmem:[%s156 + $0xb0] sm:$0x1]
      %v213 = vld [vmem:[%s156 + $0xb4] sm:$0xf]
      %v214 = vld [vmem:[%s156 + $0xb8] sm:$0xf]
      %v215 = vld [vmem:[%s156 + $0xbc] sm:$0x1]
      %v216 = vld [vmem:[%s156 + $0xc0] sm:$0xf]
      %v217 = vld [vmem:[%s156 + $0xc4] sm:$0xf]
      %v218 = vld [vmem:[%s156 + $0xc8] sm:$0x1]
      %v219 = vld [vmem:[%s156 + $0xcc] sm:$0xf]
      %v220 = vld [vmem:[%s156 + $0xd0] sm:$0xf]
      %v221 = vld [vmem:[%s156 + $0xd4] sm:$0x1]
      %v258 = vunpack.c.l.b16 %v168
      %v259 = vunpack.c.l.b16 %v169
      %v260 = vunpack.c.l.b16 %v171
      %v261 = vunpack.c.l.b16 %v172
      %v262 = vunpack.c.l.b16 %v174
      %v263 = vunpack.c.l.b16 %v175
      %v264 = vunpack.c.l.b16 %v177
      %v265 = vunpack.c.l.b16 %v178
      %v266 = vunpack.c.l.b16 %v180
      %v267 = vunpack.c.l.b16 %v181
      %v268 = vunpack.c.l.b16 %v183
      %v269 = vunpack.c.l.b16 %v184
      %v270 = vunpack.c.l.b16 %v186
      %v271 = vunpack.c.l.b16 %v187
      %v272 = vunpack.c.l.b16 %v189
      %v273 = vunpack.c.l.b16 %v190
      %v274 = vunpack.c.l.b16 %v192
      %v275 = vunpack.c.l.b16 %v193
      %v276 = vunpack.c.l.b16 %v195
      %v277 = vunpack.c.l.b16 %v196
      %v278 = vunpack.c.l.b16 %v198
      %v279 = vunpack.c.l.b16 %v199
      %v280 = vunpack.c.l.b16 %v201
      %v281 = vunpack.c.l.b16 %v202
      %v282 = vunpack.c.l.b16 %v204
      %v283 = vunpack.c.l.b16 %v205
      %v284 = vunpack.c.l.b16 %v207
      %v285 = vunpack.c.l.b16 %v208
      %v286 = vunpack.c.l.b16 %v210
      %v287 = vunpack.c.l.b16 %v211
      %v288 = vunpack.c.l.b16 %v213
      %v289 = vunpack.c.l.b16 %v214
      %v290 = vunpack.c.l.b16 %v216
      %v291 = vunpack.c.l.b16 %v217
      %v292 = vunpack.c.l.b16 %v219
      %v293 = vunpack.c.l.b16 %v220
      %v294 = vpack.c.b16 %v259, %v258
      %v295 = vpack.c.b16 %v261, %v260
      %v296 = vpack.c.b16 %v263, %v262
      %v297 = vpack.c.b16 %v265, %v264
      %v298 = vpack.c.b16 %v267, %v266
      %v299 = vpack.c.b16 %v269, %v268
      %v300 = vpack.c.b16 %v271, %v270
      %v301 = vpack.c.b16 %v273, %v272
      %v302 = vpack.c.b16 %v275, %v274
      %v303 = vpack.c.b16 %v277, %v276
      %v304 = vpack.c.b16 %v279, %v278
      %v305 = vpack.c.b16 %v281, %v280
      %v306 = vpack.c.b16 %v283, %v282
      %v307 = vpack.c.b16 %v285, %v284
      %v308 = vpack.c.b16 %v287, %v286
      %v309 = vpack.c.b16 %v289, %v288
      %v310 = vpack.c.b16 %v291, %v290
      %v311 = vpack.c.b16 %v293, %v292
      %v330 = vunpack.c.l.b16 %v170
      %v331 = vunpack.c.l.b16 %v173
      %v332 = vunpack.c.l.b16 %v176
      %v333 = vunpack.c.l.b16 %v179
      %v334 = vunpack.c.l.b16 %v182
      %v335 = vunpack.c.l.b16 %v185
      %v336 = vunpack.c.l.b16 %v188
      %v337 = vunpack.c.l.b16 %v191
      %v338 = vunpack.c.l.b16 %v194
      %v339 = vunpack.c.l.b16 %v197
      %v340 = vunpack.c.l.b16 %v200
      %v341 = vunpack.c.l.b16 %v203
      %v342 = vunpack.c.l.b16 %v206
      %v343 = vunpack.c.l.b16 %v209
      %v344 = vunpack.c.l.b16 %v212
      %v345 = vunpack.c.l.b16 %v215
      %v346 = vunpack.c.l.b16 %v218
      %v347 = vunpack.c.l.b16 %v221
      %v348 = vpack.c.b16 %v330, %v330
      %v349 = vpack.c.b16 %v331, %v331
      %v350 = vpack.c.b16 %v332, %v332
      %v351 = vpack.c.b16 %v333, %v333
      %v352 = vpack.c.b16 %v334, %v334
      %v353 = vpack.c.b16 %v335, %v335
      %v354 = vpack.c.b16 %v336, %v336
      %v355 = vpack.c.b16 %v337, %v337
      %v356 = vpack.c.b16 %v338, %v338
      %v357 = vpack.c.b16 %v339, %v339
      %v358 = vpack.c.b16 %v340, %v340
      %v359 = vpack.c.b16 %v341, %v341
      %v360 = vpack.c.b16 %v342, %v342
      %v361 = vpack.c.b16 %v343, %v343
      %v362 = vpack.c.b16 %v344, %v344
      %v363 = vpack.c.b16 %v345, %v345
      %v364 = vpack.c.b16 %v346, %v346
      %v365 = vpack.c.b16 %v347, %v347
      %vm366 = vsmask.f32 7424
      %v368 = vshrl.u32 %v294, 16
      %v370 = vshll.u32 %v294, 16
      %v372 = vrot.slane %v370, 1
      %v373 = vor.u32 %v368, %v372
      %v375 = vshll.u32 %v348, 16
      %v377 = vrot.slane %v375, 1
      %v378 = vsel %vm366, %v373, %v377
      %v380 = vshrl.u32 %v295, 16
      %v382 = vshll.u32 %v295, 16
      %v384 = vrot.slane %v382, 1
      %v385 = vor.u32 %v380, %v384
      %v387 = vshll.u32 %v349, 16
      %v389 = vrot.slane %v387, 1
      %v390 = vsel %vm366, %v385, %v389
      %v392 = vshrl.u32 %v296, 16
      %v394 = vshll.u32 %v296, 16
      %v396 = vrot.slane %v394, 1
      %v397 = vor.u32 %v392, %v396
      %v399 = vshll.u32 %v350, 16
      %v401 = vrot.slane %v399, 1
      %v402 = vsel %vm366, %v397, %v401
      %v404 = vshrl.u32 %v297, 16
      %v406 = vshll.u32 %v297, 16
      %v408 = vrot.slane %v406, 1
      %v409 = vor.u32 %v404, %v408
      %v411 = vshll.u32 %v351, 16
      %v413 = vrot.slane %v411, 1
      %v414 = vsel %vm366, %v409, %v413
      %v416 = vshrl.u32 %v298, 16
      %v418 = vshll.u32 %v298, 16
      %v420 = vrot.slane %v418, 1
      %v421 = vor.u32 %v416, %v420
      %v423 = vshll.u32 %v352, 16
      %v425 = vrot.slane %v423, 1
      %v426 = vsel %vm366, %v421, %v425
      %v428 = vshrl.u32 %v299, 16
      %v430 = vshll.u32 %v299, 16
      %v432 = vrot.slane %v430, 1
      %v433 = vor.u32 %v428, %v432
      %v435 = vshll.u32 %v353, 16
      %v437 = vrot.slane %v435, 1
      %v438 = vsel %vm366, %v433, %v437
      %v440 = vshrl.u32 %v300, 16
      %v442 = vshll.u32 %v300, 16
      %v444 = vrot.slane %v442, 1
      %v445 = vor.u32 %v440, %v444
      %v447 = vshll.u32 %v354, 16
      %v449 = vrot.slane %v447, 1
      %v450 = vsel %vm366, %v445, %v449
      %v452 = vshrl.u32 %v301, 16
      %v454 = vshll.u32 %v301, 16
      %v456 = vrot.slane %v454, 1
      %v457 = vor.u32 %v452, %v456
      %v459 = vshll.u32 %v355, 16
      %v461 = vrot.slane %v459, 1
      %v462 = vsel %vm366, %v457, %v461
      %v464 = vshrl.u32 %v302, 16
      %v466 = vshll.u32 %v302, 16
      %v468 = vrot.slane %v466, 1
      %v469 = vor.u32 %v464, %v468
      %v471 = vshll.u32 %v356, 16
      %v473 = vrot.slane %v471, 1
      %v474 = vsel %vm366, %v469, %v473
      %v476 = vshrl.u32 %v303, 16
      %v478 = vshll.u32 %v303, 16
      %v480 = vrot.slane %v478, 1
      %v481 = vor.u32 %v476, %v480
      %v483 = vshll.u32 %v357, 16
      %v485 = vrot.slane %v483, 1
      %v486 = vsel %vm366, %v481, %v485
      %v488 = vshrl.u32 %v304, 16
      %v490 = vshll.u32 %v304, 16
      %v492 = vrot.slane %v490, 1
      %v493 = vor.u32 %v488, %v492
      %v495 = vshll.u32 %v358, 16
      %v497 = vrot.slane %v495, 1
      %v498 = vsel %vm366, %v493, %v497
      %v500 = vshrl.u32 %v305, 16
      %v502 = vshll.u32 %v305, 16
      %v504 = vrot.slane %v502, 1
      %v505 = vor.u32 %v500, %v504
      %v507 = vshll.u32 %v359, 16
      %v509 = vrot.slane %v507, 1
      %v510 = vsel %vm366, %v505, %v509
      %v512 = vshrl.u32 %v306, 16
      %v514 = vshll.u32 %v306, 16
      %v516 = vrot.slane %v514, 1
      %v517 = vor.u32 %v512, %v516
      %v519 = vshll.u32 %v360, 16
      %v521 = vrot.slane %v519, 1
      %v522 = vsel %vm366, %v517, %v521
      %v524 = vshrl.u32 %v307, 16
      %v526 = vshll.u32 %v307, 16
      %v528 = vrot.slane %v526, 1
      %v529 = vor.u32 %v524, %v528
      %v531 = vshll.u32 %v361, 16
      %v533 = vrot.slane %v531, 1
      %v534 = vsel %vm366, %v529, %v533
      %v536 = vshrl.u32 %v308, 16
      %v538 = vshll.u32 %v308, 16
      %v540 = vrot.slane %v538, 1
      %v541 = vor.u32 %v536, %v540
      %v543 = vshll.u32 %v362, 16
      %v545 = vrot.slane %v543, 1
      %v546 = vsel %vm366, %v541, %v545
      %v548 = vshrl.u32 %v309, 16
      %v550 = vshll.u32 %v309, 16
      %v552 = vrot.slane %v550, 1
      %v553 = vor.u32 %v548, %v552
      %v555 = vshll.u32 %v363, 16
      %v557 = vrot.slane %v555, 1
      %v558 = vsel %vm366, %v553, %v557
      %v560 = vshrl.u32 %v310, 16
      %v562 = vshll.u32 %v310, 16
      %v564 = vrot.slane %v562, 1
      %v565 = vor.u32 %v560, %v564
      %v567 = vshll.u32 %v364, 16
      %v569 = vrot.slane %v567, 1
      %v570 = vsel %vm366, %v565, %v569
      %v572 = vshrl.u32 %v311, 16
      %v574 = vshll.u32 %v311, 16
      %v576 = vrot.slane %v574, 1
      %v577 = vor.u32 %v572, %v576
      %v579 = vshll.u32 %v365, 16
      %v581 = vrot.slane %v579, 1
      %v582 = vsel %vm366, %v577, %v581
      %583 = vrot.lane.b32.xlu0 %v378, 4
      %v584 = vpop.permute.xlu0 %583
      %585 = vrot.lane.b32.xlu0 %v390, 4
      %v586 = vpop.permute.xlu0 %585
      %587 = vrot.lane.b32.xlu0 %v402, 4
      %v588 = vpop.permute.xlu0 %587
      %589 = vrot.lane.b32.xlu0 %v414, 4
      %v590 = vpop.permute.xlu0 %589
      %591 = vrot.lane.b32.xlu0 %v426, 4
      %v592 = vpop.permute.xlu0 %591
      %593 = vrot.lane.b32.xlu0 %v438, 4
      %v594 = vpop.permute.xlu0 %593
      %595 = vrot.lane.b32.xlu0 %v450, 4
      %v596 = vpop.permute.xlu0 %595
      %597 = vrot.lane.b32.xlu0 %v462, 4
      %v598 = vpop.permute.xlu0 %597
      %599 = vrot.lane.b32.xlu0 %v474, 4
      %v600 = vpop.permute.xlu0 %599
      %601 = vrot.lane.b32.xlu0 %v486, 4
      %v602 = vpop.permute.xlu0 %601
      %603 = vrot.lane.b32.xlu0 %v498, 4
      %v604 = vpop.permute.xlu0 %603
      %605 = vrot.lane.b32.xlu0 %v510, 4
      %v606 = vpop.permute.xlu0 %605
      %607 = vrot.lane.b32.xlu0 %v522, 4
      %v608 = vpop.permute.xlu0 %607
      %609 = vrot.lane.b32.xlu0 %v534, 4
      %v610 = vpop.permute.xlu0 %609
      %611 = vrot.lane.b32.xlu0 %v546, 4
      %v612 = vpop.permute.xlu0 %611
      %613 = vrot.lane.b32.xlu0 %v558, 4
      %v614 = vpop.permute.xlu0 %613
      %615 = vrot.lane.b32.xlu0 %v570, 4
      %v616 = vpop.permute.xlu0 %615
      %617 = vrot.lane.b32.xlu0 %v582, 4
      %v618 = vpop.permute.xlu0 %617
      %vm619 = vcmask 1046528
      %v620 = vrot.slane %v294, 1
      %v621 = vrot.slane %v348, 1
      %v622 = vsel %vm619, %v620, %v621
      %v623 = vrot.slane %v295, 1
      %v624 = vrot.slane %v349, 1
      %v625 = vsel %vm619, %v623, %v624
      %v626 = vrot.slane %v296, 1
      %v627 = vrot.slane %v350, 1
      %v628 = vsel %vm619, %v626, %v627
      %v629 = vrot.slane %v297, 1
      %v630 = vrot.slane %v351, 1
      %v631 = vsel %vm619, %v629, %v630
      %v632 = vrot.slane %v298, 1
      %v633 = vrot.slane %v352, 1
      %v634 = vsel %vm619, %v632, %v633
      %v635 = vrot.slane %v299, 1
      %v636 = vrot.slane %v353, 1
      %v637 = vsel %vm619, %v635, %v636
      %v638 = vrot.slane %v300, 1
      %v639 = vrot.slane %v354, 1
      %v640 = vsel %vm619, %v638, %v639
      %v641 = vrot.slane %v301, 1
      %v642 = vrot.slane %v355, 1
      %v643 = vsel %vm619, %v641, %v642
      %v644 = vrot.slane %v302, 1
      %v645 = vrot.slane %v356, 1
      %v646 = vsel %vm619, %v644, %v645
      %v647 = vrot.slane %v303, 1
      %v648 = vrot.slane %v357, 1
      %v649 = vsel %vm619, %v647, %v648
      %v650 = vrot.slane %v304, 1
      %v651 = vrot.slane %v358, 1
      %v652 = vsel %vm619, %v650, %v651
      %v653 = vrot.slane %v305, 1
      %v654 = vrot.slane %v359, 1
      %v655 = vsel %vm619, %v653, %v654
      %v656 = vrot.slane %v306, 1
      %v657 = vrot.slane %v360, 1
      %v658 = vsel %vm619, %v656, %v657
      %v659 = vrot.slane %v307, 1
      %v660 = vrot.slane %v361, 1
      %v661 = vsel %vm619, %v659, %v660
      %v662 = vrot.slane %v308, 1
      %v663 = vrot.slane %v362, 1
      %v664 = vsel %vm619, %v662, %v663
      %v665 = vrot.slane %v309, 1
      %v666 = vrot.slane %v363, 1
      %v667 = vsel %vm619, %v665, %v666
      %v668 = vrot.slane %v310, 1
      %v669 = vrot.slane %v364, 1
      %v670 = vsel %vm619, %v668, %v669
      %v671 = vrot.slane %v311, 1
      %v672 = vrot.slane %v365, 1
      %v673 = vsel %vm619, %v671, %v672
      %674 = vrot.lane.b32.xlu0 %v622, 8
      %v675 = vpop.permute.xlu0 %674
      %676 = vrot.lane.b32.xlu0 %v625, 8
      %v677 = vpop.permute.xlu0 %676
      %678 = vrot.lane.b32.xlu0 %v628, 8
      %v679 = vpop.permute.xlu0 %678
      %680 = vrot.lane.b32.xlu0 %v631, 8
      %v681 = vpop.permute.xlu0 %680
      %682 = vrot.lane.b32.xlu0 %v634, 8
      %v683 = vpop.permute.xlu0 %682
      %684 = vrot.lane.b32.xlu0 %v637, 8
      %v685 = vpop.permute.xlu0 %684
      %686 = vrot.lane.b32.xlu0 %v640, 8
      %v687 = vpop.permute.xlu0 %686
      %688 = vrot.lane.b32.xlu0 %v643, 8
      %v689 = vpop.permute.xlu0 %688
      %690 = vrot.lane.b32.xlu0 %v646, 8
      %v691 = vpop.permute.xlu0 %690
      %692 = vrot.lane.b32.xlu0 %v649, 8
      %v693 = vpop.permute.xlu0 %692
      %694 = vrot.lane.b32.xlu0 %v652, 8
      %v695 = vpop.permute.xlu0 %694
      %696 = vrot.lane.b32.xlu0 %v655, 8
      %v697 = vpop.permute.xlu0 %696
      %698 = vrot.lane.b32.xlu0 %v658, 8
      %v699 = vpop.permute.xlu0 %698
      %700 = vrot.lane.b32.xlu0 %v661, 8
      %v701 = vpop.permute.xlu0 %700
      %702 = vrot.lane.b32.xlu0 %v664, 8
      %v703 = vpop.permute.xlu0 %702
      %704 = vrot.lane.b32.xlu0 %v667, 8
      %v705 = vpop.permute.xlu0 %704
      %706 = vrot.lane.b32.xlu0 %v670, 8
      %v707 = vpop.permute.xlu0 %706
      %708 = vrot.lane.b32.xlu0 %v673, 8
      %v709 = vpop.permute.xlu0 %708
      %vm710 = vcmask 31744
      %v712 = vsel %vm710, %v294, %v584
      %v714 = vsel %vm710, %v295, %v586
      %v716 = vsel %vm710, %v296, %v588
      %v718 = vsel %vm710, %v297, %v590
      %v720 = vsel %vm710, %v298, %v592
      %v722 = vsel %vm710, %v299, %v594
      %v724 = vsel %vm710, %v300, %v596
      %v726 = vsel %vm710, %v301, %v598
      %v728 = vsel %vm710, %v302, %v600
      %v730 = vsel %vm710, %v303, %v602
      %v732 = vsel %vm710, %v304, %v604
      %v734 = vsel %vm710, %v305, %v606
      %v736 = vsel %vm710, %v306, %v608
      %v738 = vsel %vm710, %v307, %v610
      %v740 = vsel %vm710, %v308, %v612
      %v742 = vsel %vm710, %v309, %v614
      %v744 = vsel %vm710, %v310, %v616
      %v746 = vsel %vm710, %v311, %v618
      %vm747 = vcmask 64512
      %v749 = vsel %vm747, %v712, %v675
      %v751 = vsel %vm747, %v714, %v677
      %v753 = vsel %vm747, %v716, %v679
      %v755 = vsel %vm747, %v718, %v681
      %v757 = vsel %vm747, %v720, %v683
      %v759 = vsel %vm747, %v722, %v685
      %v761 = vsel %vm747, %v724, %v687
      %v763 = vsel %vm747, %v726, %v689
      %v765 = vsel %vm747, %v728, %v691
      %v767 = vsel %vm747, %v730, %v693
      %v769 = vsel %vm747, %v732, %v695
      %v771 = vsel %vm747, %v734, %v697
      %v773 = vsel %vm747, %v736, %v699
      %v775 = vsel %vm747, %v738, %v701
      %v777 = vsel %vm747, %v740, %v703
      %v779 = vsel %vm747, %v742, %v705
      %v781 = vsel %vm747, %v744, %v707
      %v783 = vsel %vm747, %v746, %v709
      %vm784 = vcmask 97280
      %v786 = vsel %vm784, %v749, 0
      %v788 = vsel %vm784, %v751, 0
      %v790 = vsel %vm784, %v753, 0
      %v792 = vsel %vm784, %v755, 0
      %v794 = vsel %vm784, %v757, 0
      %v796 = vsel %vm784, %v759, 0
      %v798 = vsel %vm784, %v761, 0
      %v800 = vsel %vm784, %v763, 0
      %v802 = vsel %vm784, %v765, 0
      %v804 = vsel %vm784, %v767, 0
      %v806 = vsel %vm784, %v769, 0
      %v808 = vsel %vm784, %v771, 0
      %v810 = vsel %vm784, %v773, 0
      %v812 = vsel %vm784, %v775, 0
      %v814 = vsel %vm784, %v777, 0
      %v816 = vsel %vm784, %v779, 0
      %v818 = vsel %vm784, %v781, 0
      %v820 = vsel %vm784, %v783, 0
      %v822 = vld [vmem:[%s1] sm:$0xf]
      %v823 = vld [vmem:[%s1 + $0x4] sm:$0xf]
      %v824 = vld [vmem:[%s1 + $0x8] sm:$0xf]
      %v825 = vld [vmem:[%s1 + $0xc] sm:$0xf]
      %v826 = vld [vmem:[%s1 + $0x10] sm:$0xf]
      %v827 = vld [vmem:[%s1 + $0x14] sm:$0xf]
      %v828 = vld [vmem:[%s1 + $0x18] sm:$0xf]
      %v829 = vld [vmem:[%s1 + $0x1c] sm:$0xf]
      %v830 = vld [vmem:[%s1 + $0x20] sm:$0xf]
      %v831 = vld [vmem:[%s1 + $0x24] sm:$0xf]
      %v832 = vld [vmem:[%s1 + $0x28] sm:$0xf]
      %v833 = vld [vmem:[%s1 + $0x2c] sm:$0xf]
      %v834 = vld [vmem:[%s1 + $0x30] sm:$0xf]
      %v835 = vld [vmem:[%s1 + $0x34] sm:$0xf]
      %v836 = vld [vmem:[%s1 + $0x38] sm:$0xf]
      %v837 = vld [vmem:[%s1 + $0x3c] sm:$0xf]
      %s838 = scalar_lea.vmem %s1, 64
      %v839 = vld [vmem:[%s838] sm:$0xf]
      %v840 = vld [vmem:[%s838 + $0x4] sm:$0xf]
      %v841 = vld [vmem:[%s838 + $0x8] sm:$0xf]
      %v842 = vld [vmem:[%s838 + $0xc] sm:$0xf]
      %v843 = vld [vmem:[%s838 + $0x10] sm:$0xf]
      %v844 = vld [vmem:[%s838 + $0x14] sm:$0xf]
      %v845 = vld [vmem:[%s838 + $0x18] sm:$0xf]
      %v846 = vld [vmem:[%s838 + $0x1c] sm:$0xf]
      %v847 = vld [vmem:[%s838 + $0x20] sm:$0xf]
      %v848 = vld [vmem:[%s838 + $0x24] sm:$0xf]
      %v849 = vld [vmem:[%s838 + $0x28] sm:$0xf]
      %v850 = vld [vmem:[%s838 + $0x2c] sm:$0xf]
      %v851 = vld [vmem:[%s838 + $0x30] sm:$0xf]
      %v852 = vld [vmem:[%s838 + $0x34] sm:$0xf]
      %v853 = vld [vmem:[%s838 + $0x38] sm:$0xf]
      %v854 = vld [vmem:[%s838 + $0x3c] sm:$0xf]
      %v871 = vunpack.c.l.b16 %v839
      %v872 = vunpack.c.l.b16 %v840
      %v873 = vunpack.c.l.b16 %v841
      %v874 = vunpack.c.l.b16 %v842
      %v875 = vunpack.c.l.b16 %v843
      %v876 = vunpack.c.l.b16 %v844
      %v877 = vunpack.c.l.b16 %v845
      %v878 = vunpack.c.l.b16 %v846
      %v879 = vunpack.c.l.b16 %v847
      %v880 = vunpack.c.l.b16 %v848
      %v881 = vunpack.c.l.b16 %v849
      %v882 = vunpack.c.l.b16 %v850
      %v883 = vunpack.c.l.b16 %v851
      %v884 = vunpack.c.l.b16 %v852
      %v885 = vunpack.c.l.b16 %v853
      %v886 = vunpack.c.l.b16 %v854
      %v887 = vpack.c.b16 %v872, %v871
      %v888 = vpack.c.b16 %v874, %v873
      %v889 = vpack.c.b16 %v876, %v875
      %v890 = vpack.c.b16 %v878, %v877
      %v891 = vpack.c.b16 %v880, %v879
      %v892 = vpack.c.b16 %v882, %v881
      %v893 = vpack.c.b16 %v884, %v883
      %v894 = vpack.c.b16 %v886, %v885
      %903 = vmatprep.subr.bf16.mxu0 0
      %904 = vmatpush1.bf16.msra.mxu0 %v887
      %905 = vmatprep.subr.bf16.mxu0 0
      %906 = vmatpush1.bf16.msra.mxu0 %v888
      %907 = vmatprep.subr.bf16.mxu0 0
      %908 = vmatpush1.bf16.msra.mxu0 %v889
      %909 = vmatprep.subr.bf16.mxu0 0
      %910 = vmatpush1.bf16.msra.mxu0 %v890
      %911 = vmatprep.subr.bf16.mxu0 0
      %912 = vmatpush1.bf16.msra.mxu0 %v891
      %913 = vmatprep.subr.bf16.mxu0 0
      %914 = vmatpush1.bf16.msra.mxu0 %v892
      %915 = vmatprep.subr.bf16.mxu0 0
      %916 = vmatpush1.bf16.msra.mxu0 %v893
      %917 = vmatprep.subr.bf16.mxu0 0
      %918 = vmatpush1.bf16.msra.mxu0 %v894
      %919 = vmatprep.subr.bf16.mxu0 0
      %920 = vmatpush1.bf16.msra.mxu0 0
      %921 = vmatprep.subr.bf16.mxu0 0
      %922 = vmatpush1.bf16.msra.mxu0 0
      %923 = vmatprep.subr.bf16.mxu0 0
      %924 = vmatpush1.bf16.msra.mxu0 0
      %925 = vmatprep.subr.bf16.mxu0 0
      %926 = vmatpush1.bf16.msra.mxu0 0
      %927 = vmatprep.subr.bf16.mxu0 0
      %928 = vmatpush1.bf16.msra.mxu0 0
      %929 = vmatprep.subr.bf16.mxu0 0
      %930 = vmatpush1.bf16.msra.mxu0 0
      %931 = vmatprep.subr.bf16.mxu0 0
      %932 = vmatpush1.bf16.msra.mxu0 0
      %933 = vmatprep.subr.bf16.mxu0 0
      %934 = vmatpush1.bf16.msra.mxu0 0
      %935 = vmatprep.mubr.bf16.mxu0 0
      %936 = vmatmul.mubr.bf16.gmra.mrb[0].mxu0 %v788
      %v937 = vpop.f32.mrb[0].mxu0
      %v938 = vadd.f32 0.0, %v937
      %v939 = vpop.f32.mrb[0].mxu0
      %v940 = vpop.f32.mrb[0].mxu0
      %v941 = vadd.f32 0.0, %v940
      %v942 = vpop.f32.mrb[0].mxu0
      %943 = vmatprep.mubr.bf16.mxu0 0
      %944 = vmatmul.mubr.bf16.gmra.mrb[0].mxu0 %v790
      %v945 = vpop.f32.mrb[0].mxu0
      %v946 = vadd.f32 0.0, %v945
      %v947 = vpop.f32.mrb[0].mxu0
      %v948 = vpop.f32.mrb[0].mxu0
      %v949 = vadd.f32 0.0, %v948
      %v950 = vpop.f32.mrb[0].mxu0
      %951 = vmatprep.mubr.bf16.mxu0 0
      %952 = vmatmul.mubr.bf16.gmra.mrb[0].mxu0 %v792
      %v953 = vpop.f32.mrb[0].mxu0
      %v954 = vadd.f32 0.0, %v953
      %v955 = vpop.f32.mrb[0].mxu0
      %v956 = vpop.f32.mrb[0].mxu0
      %v957 = vadd.f32 0.0, %v956
      %v958 = vpop.f32.mrb[0].mxu0
      %959 = vmatprep.mubr.bf16.mxu0 0
      %960 = vmatmul.mubr.bf16.gmra.mrb[0].mxu0 %v794
      %v961 = vpop.f32.mrb[0].mxu0
      %v962 = vadd.f32 0.0, %v961
      %v963 = vpop.f32.mrb[0].mxu0
      %v964 = vpop.f32.mrb[0].mxu0
      %v965 = vadd.f32 0.0, %v964
      %v966 = vpop.f32.mrb[0].mxu0
      %967 = vmatprep.mubr.bf16.mxu0 0
      %968 = vmatmul.mubr.bf16.gmra.mrb[0].mxu0 %v796
      %v969 = vpop.f32.mrb[0].mxu0
      %v970 = vadd.f32 0.0, %v969
      %v971 = vpop.f32.mrb[0].mxu0
      %v972 = vpop.f32.mrb[0].mxu0
      %v973 = vadd.f32 0.0, %v972
      %v974 = vpop.f32.mrb[0].mxu0
      %975 = vmatprep.mubr.bf16.mxu0 0
      %976 = vmatmul.mubr.bf16.gmra.mrb[0].mxu0 %v798
      %v977 = vpop.f32.mrb[0].mxu0
      %v978 = vadd.f32 0.0, %v977
      %v979 = vpop.f32.mrb[0].mxu0
      %v980 = vpop.f32.mrb[0].mxu0
      %v981 = vadd.f32 0.0, %v980
      %v982 = vpop.f32.mrb[0].mxu0
      %983 = vmatprep.mubr.bf16.mxu0 0
      %984 = vmatmul.mubr.bf16.gmra.mrb[0].mxu0 %v800
      %v985 = vpop.f32.mrb[0].mxu0
      %v986 = vadd.f32 0.0, %v985
      %v987 = vpop.f32.mrb[0].mxu0
      %v988 = vpop.f32.mrb[0].mxu0
      %v989 = vadd.f32 0.0, %v988
      %v990 = vpop.f32.mrb[0].mxu0
      %991 = vmatprep.mubr.bf16.mxu0 0
      %992 = vmatmul.mubr.bf16.gmra.mrb[0].mxu0 %v802
      %v993 = vpop.f32.mrb[0].mxu0
      %v994 = vadd.f32 0.0, %v993
      %v995 = vpop.f32.mrb[0].mxu0
      %v996 = vpop.f32.mrb[0].mxu0
      %v997 = vadd.f32 0.0, %v996
      %v998 = vpop.f32.mrb[0].mxu0
      %999 = vmatprep.mubr.bf16.mxu0 0
      %1000 = vmatmul.mubr.bf16.gmra.mrb[0].mxu0 %v804
      %v1001 = vpop.f32.mrb[0].mxu0
      %v1002 = vadd.f32 0.0, %v1001
      %v1003 = vpop.f32.mrb[0].mxu0
      %v1004 = vpop.f32.mrb[0].mxu0
      %v1005 = vadd.f32 0.0, %v1004
      %v1006 = vpop.f32.mrb[0].mxu0
      %1007 = vmatprep.mubr.bf16.mxu0 0
      %1008 = vmatmul.mubr.bf16.gmra.mrb[0].mxu0 %v806
      %v1009 = vpop.f32.mrb[0].mxu0
      %v1010 = vadd.f32 0.0, %v1009
      %v1011 = vpop.f32.mrb[0].mxu0
      %v1012 = vpop.f32.mrb[0].mxu0
      %v1013 = vadd.f32 0.0, %v1012
      %v1014 = vpop.f32.mrb[0].mxu0
      %1015 = vmatprep.mubr.bf16.mxu0 0
      %1016 = vmatmul.mubr.bf16.gmra.mrb[0].mxu0 %v808
      %v1017 = vpop.f32.mrb[0].mxu0
      %v1018 = vadd.f32 0.0, %v1017
      %v1019 = vpop.f32.mrb[0].mxu0
      %v1020 = vpop.f32.mrb[0].mxu0
      %v1021 = vadd.f32 0.0, %v1020
      %v1022 = vpop.f32.mrb[0].mxu0
      %1023 = vmatprep.mubr.bf16.mxu0 0
      %1024 = vmatmul.mubr.bf16.gmra.mrb[0].mxu0 %v810
      %v1025 = vpop.f32.mrb[0].mxu0
      %v1026 = vadd.f32 0.0, %v1025
      %v1027 = vpop.f32.mrb[0].mxu0
      %v1028 = vpop.f32.mrb[0].mxu0
      %v1029 = vadd.f32 0.0, %v1028
      %v1030 = vpop.f32.mrb[0].mxu0
      %1031 = vmatprep.mubr.bf16.mxu0 0
      %1032 = vmatmul.mubr.bf16.gmra.mrb[0].mxu0 %v812
      %v1033 = vpop.f32.mrb[0].mxu0
      %v1034 = vadd.f32 0.0, %v1033
      %v1035 = vpop.f32.mrb[0].mxu0
      %v1036 = vpop.f32.mrb[0].mxu0
      %v1037 = vadd.f32 0.0, %v1036
      %v1038 = vpop.f32.mrb[0].mxu0
      %1039 = vmatprep.mubr.bf16.mxu0 0
      %1040 = vmatmul.mubr.bf16.gmra.mrb[0].mxu0 %v814
      %v1041 = vpop.f32.mrb[0].mxu0
      %v1042 = vadd.f32 0.0, %v1041
      %v1043 = vpop.f32.mrb[0].mxu0
      %v1044 = vpop.f32.mrb[0].mxu0
      %v1045 = vadd.f32 0.0, %v1044
      %v1046 = vpop.f32.mrb[0].mxu0
      %1047 = vmatprep.mubr.bf16.mxu0 0
      %1048 = vmatmul.mubr.bf16.gmra.mrb[0].mxu0 %v816
      %v1049 = vpop.f32.mrb[0].mxu0
      %v1050 = vadd.f32 0.0, %v1049
      %v1051 = vpop.f32.mrb[0].mxu0
      %v1052 = vpop.f32.mrb[0].mxu0
      %v1053 = vadd.f32 0.0, %v1052
      %v1054 = vpop.f32.mrb[0].mxu0
      %1055 = vmatprep.mubr.bf16.mxu0 0
      %1056 = vmatmul.mubr.bf16.gmra.mrb[0].mxu0 %v818
      %v1057 = vpop.f32.mrb[0].mxu0
      %v1058 = vadd.f32 0.0, %v1057
      %v1059 = vpop.f32.mrb[0].mxu0
      %v1060 = vpop.f32.mrb[0].mxu0
      %v1061 = vadd.f32 0.0, %v1060
      %v1062 = vpop.f32.mrb[0].mxu0
      %1063 = vdwg.mxu0
      %v1080 = vunpack.c.l.b16 %v822
      %v1081 = vunpack.c.l.b16 %v823
      %v1082 = vunpack.c.l.b16 %v824
      %v1083 = vunpack.c.l.b16 %v825
      %v1084 = vunpack.c.l.b16 %v826
      %v1085 = vunpack.c.l.b16 %v827
      %v1086 = vunpack.c.l.b16 %v828
      %v1087 = vunpack.c.l.b16 %v829
      %v1088 = vunpack.c.l.b16 %v830
      %v1089 = vunpack.c.l.b16 %v831
      %v1090 = vunpack.c.l.b16 %v832
      %v1091 = vunpack.c.l.b16 %v833
      %v1092 = vunpack.c.l.b16 %v834
      %v1093 = vunpack.c.l.b16 %v835
      %v1094 = vunpack.c.l.b16 %v836
      %v1095 = vunpack.c.l.b16 %v837
      %v1096 = vpack.c.b16 %v1081, %v1080
      %v1097 = vpack.c.b16 %v1083, %v1082
      %v1098 = vpack.c.b16 %v1085, %v1084
      %v1099 = vpack.c.b16 %v1087, %v1086
      %v1100 = vpack.c.b16 %v1089, %v1088
      %v1101 = vpack.c.b16 %v1091, %v1090
      %v1102 = vpack.c.b16 %v1093, %v1092
      %v1103 = vpack.c.b16 %v1095, %v1094
      %1112 = vmatprep.subr.bf16.mxu0 0
      %1113 = vmatpush1.bf16.msra.mxu0 %v1096
      %1114 = vmatprep.subr.bf16.mxu0 0
      %1115 = vmatpush1.bf16.msra.mxu0 %v1097
      %1116 = vmatprep.subr.bf16.mxu0 0
      %1117 = vmatpush1.bf16.msra.mxu0 %v1098
      %1118 = vmatprep.subr.bf16.mxu0 0
      %1119 = vmatpush1.bf16.msra.mxu0 %v1099
      %1120 = vmatprep.subr.bf16.mxu0 0
      %1121 = vmatpush1.bf16.msra.mxu0 %v1100
      %1122 = vmatprep.subr.bf16.mxu0 0
      %1123 = vmatpush1.bf16.msra.mxu0 %v1101
      %1124 = vmatprep.subr.bf16.mxu0 0
      %1125 = vmatpush1.bf16.msra.mxu0 %v1102
      %1126 = vmatprep.subr.bf16.mxu0 0
      %1127 = vmatpush1.bf16.msra.mxu0 %v1103
      %1128 = vmatprep.subr.bf16.mxu0 0
      %1129 = vmatpush1.bf16.msra.mxu0 0
      %1130 = vmatprep.subr.bf16.mxu0 0
      %1131 = vmatpush1.bf16.msra.mxu0 0
      %1132 = vmatprep.subr.bf16.mxu0 0
      %1133 = vmatpush1.bf16.msra.mxu0 0
      %1134 = vmatprep.subr.bf16.mxu0 0
      %1135 = vmatpush1.bf16.msra.mxu0 0
      %1136 = vmatprep.subr.bf16.mxu0 0
      %1137 = vmatpush1.bf16.msra.mxu0 0
      %1138 = vmatprep.subr.bf16.mxu0 0
      %1139 = vmatpush1.bf16.msra.mxu0 0
      %1140 = vmatprep.subr.bf16.mxu0 0
      %1141 = vmatpush1.bf16.msra.mxu0 0
      %1142 = vmatprep.subr.bf16.mxu0 0
      %1143 = vmatpush1.bf16.msra.mxu0 0
      %1144 = vmatprep.mubr.bf16.mxu0 0
      %1145 = vmatmul.mubr.bf16.gmra.mrb[0].mxu0 %v786
      %v1146 = vpop.f32.mrb[0].mxu0
      %v1147 = vadd.f32 %v938, %v1146
      %v1148 = vpop.f32.mrb[0].mxu0
      %v1149 = vpop.f32.mrb[0].mxu0
      %v1150 = vadd.f32 %v941, %v1149
      %v1151 = vpop.f32.mrb[0].mxu0
      %1152 = vmatprep.mubr.bf16.mxu0 0
      %1153 = vmatmul.mubr.bf16.gmra.mrb[0].mxu0 %v788
      %v1154 = vpop.f32.mrb[0].mxu0
      %v1155 = vadd.f32 %v946, %v1154
      %v1156 = vpop.f32.mrb[0].mxu0
      %v1157 = vpop.f32.mrb[0].mxu0
      %v1158 = vadd.f32 %v949, %v1157
      %v1159 = vpop.f32.mrb[0].mxu0
      %1160 = vmatprep.mubr.bf16.mxu0 0
      %1161 = vmatmul.mubr.bf16.gmra.mrb[0].mxu0 %v790
      %v1162 = vpop.f32.mrb[0].mxu0
      %v1163 = vadd.f32 %v954, %v1162
      %v1164 = vpop.f32.mrb[0].mxu0
      %v1165 = vpop.f32.mrb[0].mxu0
      %v1166 = vadd.f32 %v957, %v1165
      %v1167 = vpop.f32.mrb[0].mxu0
      %1168 = vmatprep.mubr.bf16.mxu0 0
      %1169 = vmatmul.mubr.bf16.gmra.mrb[0].mxu0 %v792
      %v1170 = vpop.f32.mrb[0].mxu0
      %v1171 = vadd.f32 %v962, %v1170
      %v1172 = vpop.f32.mrb[0].mxu0
      %v1173 = vpop.f32.mrb[0].mxu0
      %v1174 = vadd.f32 %v965, %v1173
      %v1175 = vpop.f32.mrb[0].mxu0
      %1176 = vmatprep.mubr.bf16.mxu0 0
      %1177 = vmatmul.mubr.bf16.gmra.mrb[0].mxu0 %v794
      %v1178 = vpop.f32.mrb[0].mxu0
      %v1179 = vadd.f32 %v970, %v1178
      %v1180 = vpop.f32.mrb[0].mxu0
      %v1181 = vpop.f32.mrb[0].mxu0
      %v1182 = vadd.f32 %v973, %v1181
      %v1183 = vpop.f32.mrb[0].mxu0
      %1184 = vmatprep.mubr.bf16.mxu0 0
      %1185 = vmatmul.mubr.bf16.gmra.mrb[0].mxu0 %v796
      %v1186 = vpop.f32.mrb[0].mxu0
      %v1187 = vadd.f32 %v978, %v1186
      %v1188 = vpop.f32.mrb[0].mxu0
      %v1189 = vpop.f32.mrb[0].mxu0
      %v1190 = vadd.f32 %v981, %v1189
      %v1191 = vpop.f32.mrb[0].mxu0
      %1192 = vmatprep.mubr.bf16.mxu0 0
      %1193 = vmatmul.mubr.bf16.gmra.mrb[0].mxu0 %v798
      %v1194 = vpop.f32.mrb[0].mxu0
      %v1195 = vadd.f32 %v986, %v1194
      %v1196 = vpop.f32.mrb[0].mxu0
      %v1197 = vpop.f32.mrb[0].mxu0
      %v1198 = vadd.f32 %v989, %v1197
      %v1199 = vpop.f32.mrb[0].mxu0
      %1200 = vmatprep.mubr.bf16.mxu0 0
      %1201 = vmatmul.mubr.bf16.gmra.mrb[0].mxu0 %v800
      %v1202 = vpop.f32.mrb[0].mxu0
      %v1203 = vadd.f32 %v994, %v1202
      %v1204 = vpop.f32.mrb[0].mxu0
      %v1205 = vpop.f32.mrb[0].mxu0
      %v1206 = vadd.f32 %v997, %v1205
      %v1207 = vpop.f32.mrb[0].mxu0
      %1208 = vmatprep.mubr.bf16.mxu0 0
      %1209 = vmatmul.mubr.bf16.gmra.mrb[0].mxu0 %v802
      %v1210 = vpop.f32.mrb[0].mxu0
      %v1211 = vadd.f32 %v1002, %v1210
      %v1212 = vpop.f32.mrb[0].mxu0
      %v1213 = vpop.f32.mrb[0].mxu0
      %v1214 = vadd.f32 %v1005, %v1213
      %v1215 = vpop.f32.mrb[0].mxu0
      %1216 = vmatprep.mubr.bf16.mxu0 0
      %1217 = vmatmul.mubr.bf16.gmra.mrb[0].mxu0 %v804
      %v1218 = vpop.f32.mrb[0].mxu0
      %v1219 = vadd.f32 %v1010, %v1218
      %v1220 = vpop.f32.mrb[0].mxu0
      %v1221 = vpop.f32.mrb[0].mxu0
      %v1222 = vadd.f32 %v1013, %v1221
      %v1223 = vpop.f32.mrb[0].mxu0
      %1224 = vmatprep.mubr.bf16.mxu0 0
      %1225 = vmatmul.mubr.bf16.gmra.mrb[0].mxu0 %v806
      %v1226 = vpop.f32.mrb[0].mxu0
      %v1227 = vadd.f32 %v1018, %v1226
      %v1228 = vpop.f32.mrb[0].mxu0
      %v1229 = vpop.f32.mrb[0].mxu0
      %v1230 = vadd.f32 %v1021, %v1229
      %v1231 = vpop.f32.mrb[0].mxu0
      %1232 = vmatprep.mubr.bf16.mxu0 0
      %1233 = vmatmul.mubr.bf16.gmra.mrb[0].mxu0 %v808
      %v1234 = vpop.f32.mrb[0].mxu0
      %v1235 = vadd.f32 %v1026, %v1234
      %v1236 = vpop.f32.mrb[0].mxu0
      %v1237 = vpop.f32.mrb[0].mxu0
      %v1238 = vadd.f32 %v1029, %v1237
      %v1239 = vpop.f32.mrb[0].mxu0
      %1240 = vmatprep.mubr.bf16.mxu0 0
      %1241 = vmatmul.mubr.bf16.gmra.mrb[0].mxu0 %v810
      %v1242 = vpop.f32.mrb[0].mxu0
      %v1243 = vadd.f32 %v1034, %v1242
      %v1244 = vpop.f32.mrb[0].mxu0
      %v1245 = vpop.f32.mrb[0].mxu0
      %v1246 = vadd.f32 %v1037, %v1245
      %v1247 = vpop.f32.mrb[0].mxu0
      %1248 = vmatprep.mubr.bf16.mxu0 0
      %1249 = vmatmul.mubr.bf16.gmra.mrb[0].mxu0 %v812
      %v1250 = vpop.f32.mrb[0].mxu0
      %v1251 = vadd.f32 %v1042, %v1250
      %v1252 = vpop.f32.mrb[0].mxu0
      %v1253 = vpop.f32.mrb[0].mxu0
      %v1254 = vadd.f32 %v1045, %v1253
      %v1255 = vpop.f32.mrb[0].mxu0
      %1256 = vmatprep.mubr.bf16.mxu0 0
      %1257 = vmatmul.mubr.bf16.gmra.mrb[0].mxu0 %v814
      %v1258 = vpop.f32.mrb[0].mxu0
      %v1259 = vadd.f32 %v1050, %v1258
      %v1260 = vpop.f32.mrb[0].mxu0
      %v1261 = vpop.f32.mrb[0].mxu0
      %v1262 = vadd.f32 %v1053, %v1261
      %v1263 = vpop.f32.mrb[0].mxu0
      %1264 = vmatprep.mubr.bf16.mxu0 0
      %1265 = vmatmul.mubr.bf16.gmra.mrb[0].mxu0 %v816
      %v1266 = vpop.f32.mrb[0].mxu0
      %v1267 = vadd.f32 %v1058, %v1266
      %v1268 = vpop.f32.mrb[0].mxu0
      %v1269 = vpop.f32.mrb[0].mxu0
      %v1270 = vadd.f32 %v1061, %v1269
      %v1271 = vpop.f32.mrb[0].mxu0
      %1272 = vdwg.mxu0
      %s1273 = scalar_lea.vmem %s1, 128
      %v1274 = vld [vmem:[%s1273] sm:$0xf]
      %v1275 = vld [vmem:[%s1273 + $0x4] sm:$0xf]
      %v1276 = vld [vmem:[%s1273 + $0x8] sm:$0xf]
      %v1277 = vld [vmem:[%s1273 + $0xc] sm:$0xf]
      %v1278 = vld [vmem:[%s1273 + $0x10] sm:$0xf]
      %v1279 = vld [vmem:[%s1273 + $0x14] sm:$0xf]
      %v1280 = vld [vmem:[%s1273 + $0x18] sm:$0xf]
      %v1281 = vld [vmem:[%s1273 + $0x1c] sm:$0xf]
      %v1282 = vld [vmem:[%s1273 + $0x20] sm:$0xf]
      %v1283 = vld [vmem:[%s1273 + $0x24] sm:$0xf]
      %v1284 = vld [vmem:[%s1273 + $0x28] sm:$0xf]
      %v1285 = vld [vmem:[%s1273 + $0x2c] sm:$0xf]
      %v1286 = vld [vmem:[%s1273 + $0x30] sm:$0xf]
      %v1287 = vld [vmem:[%s1273 + $0x34] sm:$0xf]
      %v1288 = vld [vmem:[%s1273 + $0x38] sm:$0xf]
      %v1289 = vld [vmem:[%s1273 + $0x3c] sm:$0xf]
      %v1306 = vunpack.c.l.b16 %v1274
      %v1307 = vunpack.c.l.b16 %v1275
      %v1308 = vunpack.c.l.b16 %v1276
      %v1309 = vunpack.c.l.b16 %v1277
      %v1310 = vunpack.c.l.b16 %v1278
      %v1311 = vunpack.c.l.b16 %v1279
      %v1312 = vunpack.c.l.b16 %v1280
      %v1313 = vunpack.c.l.b16 %v1281
      %v1314 = vunpack.c.l.b16 %v1282
      %v1315 = vunpack.c.l.b16 %v1283
      %v1316 = vunpack.c.l.b16 %v1284
      %v1317 = vunpack.c.l.b16 %v1285
      %v1318 = vunpack.c.l.b16 %v1286
      %v1319 = vunpack.c.l.b16 %v1287
      %v1320 = vunpack.c.l.b16 %v1288
      %v1321 = vunpack.c.l.b16 %v1289
      %v1322 = vpack.c.b16 %v1307, %v1306
      %v1323 = vpack.c.b16 %v1309, %v1308
      %v1324 = vpack.c.b16 %v1311, %v1310
      %v1325 = vpack.c.b16 %v1313, %v1312
      %v1326 = vpack.c.b16 %v1315, %v1314
      %v1327 = vpack.c.b16 %v1317, %v1316
      %v1328 = vpack.c.b16 %v1319, %v1318
      %v1329 = vpack.c.b16 %v1321, %v1320
      %1338 = vmatprep.subr.bf16.mxu0 0
      %1339 = vmatpush1.bf16.msra.mxu0 %v1322
      %1340 = vmatprep.subr.bf16.mxu0 0
      %1341 = vmatpush1.bf16.msra.mxu0 %v1323
      %1342 = vmatprep.subr.bf16.mxu0 0
      %1343 = vmatpush1.bf16.msra.mxu0 %v1324
      %1344 = vmatprep.subr.bf16.mxu0 0
      %1345 = vmatpush1.bf16.msra.mxu0 %v1325
      %1346 = vmatprep.subr.bf16.mxu0 0
      %1347 = vmatpush1.bf16.msra.mxu0 %v1326
      %1348 = vmatprep.subr.bf16.mxu0 0
      %1349 = vmatpush1.bf16.msra.mxu0 %v1327
      %1350 = vmatprep.subr.bf16.mxu0 0
      %1351 = vmatpush1.bf16.msra.mxu0 %v1328
      %1352 = vmatprep.subr.bf16.mxu0 0
      %1353 = vmatpush1.bf16.msra.mxu0 %v1329
      %1354 = vmatprep.subr.bf16.mxu0 0
      %1355 = vmatpush1.bf16.msra.mxu0 0
      %1356 = vmatprep.subr.bf16.mxu0 0
      %1357 = vmatpush1.bf16.msra.mxu0 0
      %1358 = vmatprep.subr.bf16.mxu0 0
      %1359 = vmatpush1.bf16.msra.mxu0 0
      %1360 = vmatprep.subr.bf16.mxu0 0
      %1361 = vmatpush1.bf16.msra.mxu0 0
      %1362 = vmatprep.subr.bf16.mxu0 0
      %1363 = vmatpush1.bf16.msra.mxu0 0
      %1364 = vmatprep.subr.bf16.mxu0 0
      %1365 = vmatpush1.bf16.msra.mxu0 0
      %1366 = vmatprep.subr.bf16.mxu0 0
      %1367 = vmatpush1.bf16.msra.mxu0 0
      %1368 = vmatprep.subr.bf16.mxu0 0
      %1369 = vmatpush1.bf16.msra.mxu0 0
      %1370 = vmatprep.mubr.bf16.mxu0 0
      %1371 = vmatmul.mubr.bf16.gmra.mrb[0].mxu0 %v790
      %v1372 = vpop.f32.mrb[0].mxu0
      %v1373 = vadd.f32 0.0, %v1372
      %v1374 = vpop.f32.mrb[0].mxu0
      %v1375 = vpop.f32.mrb[0].mxu0
      %v1376 = vadd.f32 0.0, %v1375
      %v1377 = vpop.f32.mrb[0].mxu0
      %1378 = vmatprep.mubr.bf16.mxu0 0
      %1379 = vmatmul.mubr.bf16.gmra.mrb[0].mxu0 %v792
      %v1380 = vpop.f32.mrb[0].mxu0
      %v1381 = vadd.f32 0.0, %v1380
      %v1382 = vpop.f32.mrb[0].mxu0
      %v1383 = vpop.f32.mrb[0].mxu0
      %v1384 = vadd.f32 0.0, %v1383
      %v1385 = vpop.f32.mrb[0].mxu0
      %1386 = vmatprep.mubr.bf16.mxu0 0
      %1387 = vmatmul.mubr.bf16.gmra.mrb[0].mxu0 %v794
      %v1388 = vpop.f32.mrb[0].mxu0
      %v1389 = vadd.f32 0.0, %v1388
      %v1390 = vpop.f32.mrb[0].mxu0
      %v1391 = vpop.f32.mrb[0].mxu0
      %v1392 = vadd.f32 0.0, %v1391
      %v1393 = vpop.f32.mrb[0].mxu0
      %1394 = vmatprep.mubr.bf16.mxu0 0
      %1395 = vmatmul.mubr.bf16.gmra.mrb[0].mxu0 %v796
      %v1396 = vpop.f32.mrb[0].mxu0
      %v1397 = vadd.f32 0.0, %v1396
      %v1398 = vpop.f32.mrb[0].mxu0
      %v1399 = vpop.f32.mrb[0].mxu0
      %v1400 = vadd.f32 0.0, %v1399
      %v1401 = vpop.f32.mrb[0].mxu0
      %1402 = vmatprep.mubr.bf16.mxu0 0
      %1403 = vmatmul.mubr.bf16.gmra.mrb[0].mxu0 %v798
      %v1404 = vpop.f32.mrb[0].mxu0
      %v1405 = vadd.f32 0.0, %v1404
      %v1406 = vpop.f32.mrb[0].mxu0
      %v1407 = vpop.f32.mrb[0].mxu0
      %v1408 = vadd.f32 0.0, %v1407
      %v1409 = vpop.f32.mrb[0].mxu0
      %1410 = vmatprep.mubr.bf16.mxu0 0
      %1411 = vmatmul.mubr.bf16.gmra.mrb[0].mxu0 %v800
      %v1412 = vpop.f32.mrb[0].mxu0
      %v1413 = vadd.f32 0.0, %v1412
      %v1414 = vpop.f32.mrb[0].mxu0
      %v1415 = vpop.f32.mrb[0].mxu0
      %v1416 = vadd.f32 0.0, %v1415
      %v1417 = vpop.f32.mrb[0].mxu0
      %1418 = vmatprep.mubr.bf16.mxu0 0
      %1419 = vmatmul.mubr.bf16.gmra.mrb[0].mxu0 %v802
      %v1420 = vpop.f32.mrb[0].mxu0
      %v1421 = vadd.f32 0.0, %v1420
      %v1422 = vpop.f32.mrb[0].mxu0
      %v1423 = vpop.f32.mrb[0].mxu0
      %v1424 = vadd.f32 0.0, %v1423
      %v1425 = vpop.f32.mrb[0].mxu0
      %1426 = vmatprep.mubr.bf16.mxu0 0
      %1427 = vmatmul.mubr.bf16.gmra.mrb[0].mxu0 %v804
      %v1428 = vpop.f32.mrb[0].mxu0
      %v1429 = vadd.f32 0.0, %v1428
      %v1430 = vpop.f32.mrb[0].mxu0
      %v1431 = vpop.f32.mrb[0].mxu0
      %v1432 = vadd.f32 0.0, %v1431
      %v1433 = vpop.f32.mrb[0].mxu0
      %1434 = vmatprep.mubr.bf16.mxu0 0
      %1435 = vmatmul.mubr.bf16.gmra.mrb[0].mxu0 %v806
      %v1436 = vpop.f32.mrb[0].mxu0
      %v1437 = vadd.f32 0.0, %v1436
      %v1438 = vpop.f32.mrb[0].mxu0
      %v1439 = vpop.f32.mrb[0].mxu0
      %v1440 = vadd.f32 0.0, %v1439
      %v1441 = vpop.f32.mrb[0].mxu0
      %1442 = vmatprep.mubr.bf16.mxu0 0
      %1443 = vmatmul.mubr.bf16.gmra.mrb[0].mxu0 %v808
      %v1444 = vpop.f32.mrb[0].mxu0
      %v1445 = vadd.f32 0.0, %v1444
      %v1446 = vpop.f32.mrb[0].mxu0
      %v1447 = vpop.f32.mrb[0].mxu0
      %v1448 = vadd.f32 0.0, %v1447
      %v1449 = vpop.f32.mrb[0].mxu0
      %1450 = vmatprep.mubr.bf16.mxu0 0
      %1451 = vmatmul.mubr.bf16.gmra.mrb[0].mxu0 %v810
      %v1452 = vpop.f32.mrb[0].mxu0
      %v1453 = vadd.f32 0.0, %v1452
      %v1454 = vpop.f32.mrb[0].mxu0
      %v1455 = vpop.f32.mrb[0].mxu0
      %v1456 = vadd.f32 0.0, %v1455
      %v1457 = vpop.f32.mrb[0].mxu0
      %1458 = vmatprep.mubr.bf16.mxu0 0
      %1459 = vmatmul.mubr.bf16.gmra.mrb[0].mxu0 %v812
      %v1460 = vpop.f32.mrb[0].mxu0
      %v1461 = vadd.f32 0.0, %v1460
      %v1462 = vpop.f32.mrb[0].mxu0
      %v1463 = vpop.f32.mrb[0].mxu0
      %v1464 = vadd.f32 0.0, %v1463
      %v1465 = vpop.f32.mrb[0].mxu0
      %1466 = vmatprep.mubr.bf16.mxu0 0
      %1467 = vmatmul.mubr.bf16.gmra.mrb[0].mxu0 %v814
      %v1468 = vpop.f32.mrb[0].mxu0
      %v1469 = vadd.f32 0.0, %v1468
      %v1470 = vpop.f32.mrb[0].mxu0
      %v1471 = vpop.f32.mrb[0].mxu0
      %v1472 = vadd.f32 0.0, %v1471
      %v1473 = vpop.f32.mrb[0].mxu0
      %1474 = vmatprep.mubr.bf16.mxu0 0
      %1475 = vmatmul.mubr.bf16.gmra.mrb[0].mxu0 %v816
      %v1476 = vpop.f32.mrb[0].mxu0
      %v1477 = vadd.f32 0.0, %v1476
      %v1478 = vpop.f32.mrb[0].mxu0
      %v1479 = vpop.f32.mrb[0].mxu0
      %v1480 = vadd.f32 0.0, %v1479
      %v1481 = vpop.f32.mrb[0].mxu0
      %1482 = vmatprep.mubr.bf16.mxu0 0
      %1483 = vmatmul.mubr.bf16.gmra.mrb[0].mxu0 %v818
      %v1484 = vpop.f32.mrb[0].mxu0
      %v1485 = vadd.f32 0.0, %v1484
      %v1486 = vpop.f32.mrb[0].mxu0
      %v1487 = vpop.f32.mrb[0].mxu0
      %v1488 = vadd.f32 0.0, %v1487
      %v1489 = vpop.f32.mrb[0].mxu0
      %1490 = vmatprep.mubr.bf16.mxu0 0
      %1491 = vmatmul.mubr.bf16.gmra.mrb[0].mxu0 %v820
      %v1492 = vpop.f32.mrb[0].mxu0
      %v1493 = vadd.f32 0.0, %v1492
      %v1494 = vpop.f32.mrb[0].mxu0
      %v1495 = vpop.f32.mrb[0].mxu0
      %v1496 = vadd.f32 0.0, %v1495
      %v1497 = vpop.f32.mrb[0].mxu0
      %1498 = vdwg.mxu0
      %v1499 = vadd.f32 %v1147, %v1373
      %v1500 = vadd.f32 %v1150, %v1376
      %v1501 = vadd.f32 %v1155, %v1381
      %v1502 = vadd.f32 %v1158, %v1384
      %v1503 = vadd.f32 %v1163, %v1389
      %v1504 = vadd.f32 %v1166, %v1392
      %v1505 = vadd.f32 %v1171, %v1397
      %v1506 = vadd.f32 %v1174, %v1400
      %v1507 = vadd.f32 %v1179, %v1405
      %v1508 = vadd.f32 %v1182, %v1408
      %v1509 = vadd.f32 %v1187, %v1413
      %v1510 = vadd.f32 %v1190, %v1416
      %v1511 = vadd.f32 %v1195, %v1421
      %v1512 = vadd.f32 %v1198, %v1424
      %v1513 = vadd.f32 %v1203, %v1429
      %v1514 = vadd.f32 %v1206, %v1432
      %v1515 = vadd.f32 %v1211, %v1437
      %v1516 = vadd.f32 %v1214, %v1440
      %v1517 = vadd.f32 %v1219, %v1445
      %v1518 = vadd.f32 %v1222, %v1448
      %v1519 = vadd.f32 %v1227, %v1453
      %v1520 = vadd.f32 %v1230, %v1456
      %v1521 = vadd.f32 %v1235, %v1461
      %v1522 = vadd.f32 %v1238, %v1464
      %v1523 = vadd.f32 %v1243, %v1469
      %v1524 = vadd.f32 %v1246, %v1472
      %v1525 = vadd.f32 %v1251, %v1477
      %v1526 = vadd.f32 %v1254, %v1480
      %v1527 = vadd.f32 %v1259, %v1485
      %v1528 = vadd.f32 %v1262, %v1488
      %v1529 = vadd.f32 %v1267, %v1493
      %v1530 = vadd.f32 %v1270, %v1496
      %1531 = vst.msk [vmem:[%s165] sm:$0xff] %vm747, %v1499
      %1532 = vst.msk [vmem:[%s165 + $0x8] sm:$0xff] %vm747, %v1500
      %1533 = vst.msk [vmem:[%s165 + $0x10] sm:$0xff] %vm747, %v1501
      %1534 = vst.msk [vmem:[%s165 + $0x18] sm:$0xff] %vm747, %v1502
      %1535 = vst.msk [vmem:[%s165 + $0x20] sm:$0xff] %vm747, %v1503
      %1536 = vst.msk [vmem:[%s165 + $0x28] sm:$0xff] %vm747, %v1504
      %1537 = vst.msk [vmem:[%s165 + $0x30] sm:$0xff] %vm747, %v1505
      %1538 = vst.msk [vmem:[%s165 + $0x38] sm:$0xff] %vm747, %v1506
      %1539 = vst.msk [vmem:[%s165 + $0x40] sm:$0xff] %vm747, %v1507
      %1540 = vst.msk [vmem:[%s165 + $0x48] sm:$0xff] %vm747, %v1508
      %1541 = vst.msk [vmem:[%s165 + $0x50] sm:$0xff] %vm747, %v1509
      %1542 = vst.msk [vmem:[%s165 + $0x58] sm:$0xff] %vm747, %v1510
      %1543 = vst.msk [vmem:[%s165 + $0x60] sm:$0xff] %vm747, %v1511
      %1544 = vst.msk [vmem:[%s165 + $0x68] sm:$0xff] %vm747, %v1512
      %1545 = vst.msk [vmem:[%s165 + $0x70] sm:$0xff] %vm747, %v1513
      %1546 = vst.msk [vmem:[%s165 + $0x78] sm:$0xff] %vm747, %v1514
      %1547 = vst.msk [vmem:[%s165 + $0x80] sm:$0xff] %vm747, %v1515
      %1548 = vst.msk [vmem:[%s165 + $0x88] sm:$0xff] %vm747, %v1516
      %1549 = vst.msk [vmem:[%s165 + $0x90] sm:$0xff] %vm747, %v1517
      %1550 = vst.msk [vmem:[%s165 + $0x98] sm:$0xff] %vm747, %v1518
      %1551 = vst.msk [vmem:[%s165 + $0xa0] sm:$0xff] %vm747, %v1519
      %1552 = vst.msk [vmem:[%s165 + $0xa8] sm:$0xff] %vm747, %v1520
      %1553 = vst.msk [vmem:[%s165 + $0xb0] sm:$0xff] %vm747, %v1521
      %1554 = vst.msk [vmem:[%s165 + $0xb8] sm:$0xff] %vm747, %v1522
      %1555 = vst.msk [vmem:[%s165 + $0xc0] sm:$0xff] %vm747, %v1523
      %1556 = vst.msk [vmem:[%s165 + $0xc8] sm:$0xff] %vm747, %v1524
      %1557 = vst.msk [vmem:[%s165 + $0xd0] sm:$0xff] %vm747, %v1525
      %1558 = vst.msk [vmem:[%s165 + $0xd8] sm:$0xff] %vm747, %v1526
      %1559 = vst.msk [vmem:[%s165 + $0xe0] sm:$0xff] %vm747, %v1527
      %1560 = vst.msk [vmem:[%s165 + $0xe8] sm:$0xff] %vm747, %v1528
      %1561 = vst.msk [vmem:[%s165 + $0xf0] sm:$0xff] %vm747, %v1529
      %1562 = vst.msk [vmem:[%s165 + $0xf8] sm:$0xff] %vm747, %v1530
      %s1563 = smul.u32 32, %s18
      %p1564 = scmp.lt.s32.totalorder %s17, 1
      %s1565 = scalar_select %p1564, %s17, 1
      %p1566 = scmp.lt.s32.totalorder %s1563, 31
      %s1567 = scalar_select %p1566, %s1563, 31
      %s1568 = smul.addr %s1565, 32
      %s1569 = sadd.s32 %s1567, %s1568
      %s1570 = smul.addr %s1569, 8
      %s1571 = scalar_lea.vmem %s2, %s1570
      // Predicated region
      $region29: #{tpu_custom_call.1} parent=27 // pred_check
        %p1572 = pneg %p92
      $region30: #{tpu_custom_call.1} parent=27 // pred_check_branch
        %1574 = sbr.rel (%p1572) target = $region32
      $region31: #{tpu_custom_call.1} parent=27 // pred_region
        %s1575 = smul.u32 32, %s18
      $region32: #{tpu_custom_call.1} parent=27 // pred_fallthru
        _
    $region28: #{tpu_custom_call.1} parent=5 // pred_fallthru
      _
    %p1576 = scmp.le.s32.totalorder 2, %s8
    // Predicated region
    $region33: #{tpu_custom_call.1} parent=5 // pred_check
      %p1577 = pneg %p1576
    $region34: #{tpu_custom_call.1} parent=5 // pred_check_branch
      %1579 = sbr.rel (%p1577) target = $region36
    $region35: #{tpu_custom_call.1} parent=5 // pred_region
      %s1580 = ssub.s32 %s8, 2
      // Predicated region
      $region37: #{tpu_custom_call.1} parent=35 // pred_check
        %p1581 = pneg %p98
      $region38: #{tpu_custom_call.1} parent=35 // pred_check_branch
        %1583 = sbr.rel (%p1581) target = $region40
      $region39: #{tpu_custom_call.1} parent=35 // pred_region
        %s1584 = smul.u32 32, %s20
        %p1585 = scmp.lt.s32.totalorder %s19, 1
        %s1586 = scalar_select %p1585, %s19, 1
        %p1587 = scmp.lt.s32.totalorder %s1584, 31
        %s1588 = scalar_select %p1587, %s1584, 31
        %s1589 = smul.addr %s1586, 32
        %s1590 = sadd.s32 %s1588, %s1589
        %s1591 = smul.addr %s1590, 8
        %s1592 = scalar_lea.vmem %s2, %s1591
      $region40: #{tpu_custom_call.1} parent=35 // pred_fallthru
        _
    $region36: #{tpu_custom_call.1} parent=5 // pred_fallthru
      _
  $region6: #{tpu_custom_call.1} parent=0 // loop_footer
    %s12 = sadd.s32 1, %s8
  $region7: #{tpu_custom_call.1} parent=0 // loop_footer_branch
    %7 = sbr.rel target = $region3
  $region8: #{tpu_custom_call.1} parent=0 // loop_exit
    _

</llo_original>
